<compile_context>
chip_gen: v5e
topology: v5e:2x2
jax: 0.10.0
libtpu: 0.0.40
codegen_flags: <defaults>
</compile_context>

<pallas_src>
import functools
import math

import numpy as np
import jax
import jax.numpy as jnp
from jax import lax
from jax.experimental import pallas as pl
from jax.experimental.pallas import tpu as pltpu

_INV_SQRT8 = 1.0 / math.sqrt(8.0)


def _wavelet_l1_kernel(x_ref, y_ref, o_ref, acc_ref, *,
                       w, hw, chunk_rows, acc_rows, n_chunks, w_pow2, scale):
    """One (1, t_rows, 2*hw) tile of x and y.

    Lane l = kd*hw + h*w + w_idx  (kd = D offset inside the 2x2x2 block).
    Row   = (c, d2); rows are independent, so row chunking is unconstrained.
    """
    r = pl.program_id(2)

    @pl.when(r == 0)
    def _init():
        acc_ref[...] = jnp.zeros_like(acc_ref)

    lanes = 2 * hw
    # Parity masks along the lane axis; computed once per grid step and reused
    # by every chunk (hoisted out of the loop on purpose).
    lane = lax.broadcasted_iota(jnp.int32, (chunk_rows, lanes), 1)
    w_even = (lane & 1) == 0                       # w parity (W is even)
    if w_pow2:
        h_even = (lane & w) == 0                   # ((lane // W) & 1) == 0
    else:
        # TODO(synk): non-power-of-two W relies on vector integer division.
        h_even = ((lane // w) & 1) == 0

    def chunk_contrib(row0):
        xv = x_ref[0, pl.ds(row0, chunk_rows), :].astype(jnp.float32)
        yv = y_ref[0, pl.ds(row0, chunk_rows), :].astype(jnp.float32)
        d = xv - yv                                 # (chunk_rows, 2*hw)

        # ---- stage 1: W pairs (adjacent lanes).  Dense trick: even-w lane
        # holds the pair sum, odd-w lane the pair diff; wrapped lanes are
        # never selected, so the rotation wrap-around is harmless.
        nxt = pltpu.roll(d, lanes - 1, axis=1)      # d[l + 1]
        dfp = pltpu.roll(d - nxt, 1, axis=1)        # (d[l] - d[l+1]) seen at l
        c1 = jnp.where(w_even, d + nxt, dfp)

        # ---- stage 2: H pairs (lanes l and l + W), same trick.
        nxt = pltpu.roll(c1, lanes - w, axis=1)     # c1[l + W]
        dfp = pltpu.roll(c1 - nxt, w, axis=1)
        c2 = jnp.where(h_even, c1 + nxt, dfp)

        # ---- stage 3: D pairs == contiguous halves of the lane axis.
        top = c2[:, :hw]                            # kd = 0
        bot = c2[:, hw:]                            # kd = 1
        contrib = jnp.abs(top + bot) + jnp.abs(top - bot)   # (chunk_rows, hw)

        # Aligned sublane-block reduction -> (acc_rows, hw): pure VALU adds.
        return contrib.reshape(chunk_rows // acc_rows, acc_rows, hw).sum(axis=0)

    if n_chunks == 1:
        partial = chunk_contrib(0)
    else:
        def body(i, carry):
            row0 = pl.multiple_of(i * chunk_rows, chunk_rows)
            return carry + chunk_contrib(row0)
        partial = lax.fori_loop(0, n_chunks, body,
                                jnp.zeros((acc_rows, hw), jnp.float32),
                                unroll=n_chunks <= 4)

    acc_ref[...] += partial                         # single RMW per grid step

    @pl.when(r == pl.num_programs(2) - 1)
    def _finalize():
        total = jnp.sum(acc_ref[...], keepdims=True)        # (1, 1)
        o_ref[...] = (total * np.float32(scale)).reshape(1, 1, 1, 1)


def _pick_row_tile(n_rows, row_bytes, target_bytes):
    """Largest (8-multiple or full-extent) divisor of n_rows under the budget."""
    cands = sorted({t for t in range(8, n_rows + 1, 8) if n_rows % t == 0}
                   | {n_rows})
    fitting = [t for t in cands if t * row_bytes <= target_bytes]
    return max(fitting) if fitting else min(cands)


def _pick_chunk_rows(t_rows, lane_bytes_f32, target_bytes=256 * 1024):
    """In-kernel row chunk: keeps the elementwise chain near vreg size."""
    if t_rows % 8 != 0:
        return t_rows
    for c in (32, 24, 16, 8):
        if t_rows % c == 0 and c * lane_bytes_f32 <= target_bytes:
            return c
    return 8


def wavelet_loss_3d(inputs, targets, *, target_block_bytes=4 << 20,
                    vmem_limit_bytes=None):
    B, C, D, H, W = inputs.shape
    assert targets.shape == inputs.shape
    assert D % 2 == 0 and H % 2 == 0 and W % 2 == 0

    HW = H * W
    S = 2 * HW                                   # lane extent: (kd, h, w)
    R = C * (D // 2)                             # row extent:  (c, d2)
    itemsize = np.dtype(inputs.dtype).itemsize
    row_bytes = S * itemsize

    t_rows = _pick_row_tile(R, row_bytes, target_block_bytes)
    n_r = R // t_rows
    tile_bytes = t_rows * row_bytes

    chunk_rows = _pick_chunk_rows(t_rows, S * 4)
    acc_rows = 8 if chunk_rows % 8 == 0 else chunk_rows
    n_chunks = t_rows // chunk_rows

    # Split row tiles across both TensorCores when the batch alone can't keep
    # a megacore busy (odd B, e.g. B == 1).  Harmless on single-core chips.
    n_split = 2 if (B % 2 == 1 and n_r % 2 == 0 and n_r >= 2) else 1
    n_r_inner = n_r // n_split

    # Free reshapes only (merging adjacent row-major dims, no data movement).
    x3 = inputs.reshape(B, R, S)
    y3 = targets.reshape(B, R, S)

    # loss_b = (1/sqrt(8)) * sum|butterfly(x - y)| / (number of coefficients)
    scale = _INV_SQRT8 / float(C * D * H * W)

    kernel = functools.partial(
        _wavelet_l1_kernel, w=W, hw=HW, chunk_rows=chunk_rows,
        acc_rows=acc_rows, n_chunks=n_chunks,
        w_pow2=(W & (W - 1)) == 0, scale=scale)

    if vmem_limit_bytes is None:
        # 2 inputs x 2 pipeline buffers x tile + headroom for f32 chunk
        # intermediates / acc; keeps v7x's 64 MiB budget comfortable.
        vmem_limit_bytes = min(4 * tile_bytes + (16 << 20), 64 << 20)

    out = pl.pallas_call(
        kernel,
        out_shape=jax.ShapeDtypeStruct((n_split, B, 1, 1), jnp.float32),
        grid_spec=pltpu.PrefetchScalarGridSpec(
            num_scalar_prefetch=0,
            grid=(n_split, B, n_r_inner),
            in_specs=[
                pl.BlockSpec((1, t_rows, S),
                             lambda s, b, r: (b, s * n_r_inner + r, 0)),
                pl.BlockSpec((1, t_rows, S),
                             lambda s, b, r: (b, s * n_r_inner + r, 0)),
            ],
            out_specs=pl.BlockSpec((1, 1, 1, 1), lambda s, b, r: (s, b, 0, 0)),
            scratch_shapes=[pltpu.VMEM((acc_rows, HW), jnp.float32)],
        ),
        compiler_params=pltpu.CompilerParams(
            dimension_semantics=("parallel", "parallel", "arbitrary"),
            vmem_limit_bytes=int(vmem_limit_bytes),
        ),
    )(x3, y3)

    return out.sum(axis=0).reshape(B, 1, 1, 1)


# ----------------------------- pure-JAX reference ----------------------------
def _dwt3_ref(x):
    B, C, D, H, W = x.shape
    x6 = x.reshape(B, C, D // 2, 2, H // 2, 2, W // 2, 2)
    filt = np.zeros((2, 2, 2, 8), np.float32)
    for s in range(8):
        sd, sh, sw = (s >> 2) & 1, (s >> 1) & 1, s & 1
        for kd in range(2):
            for kh in range(2):
                for kw in range(2):
                    filt[kd, kh, kw, s] = ((-1.0) ** (sd * kd + sh * kh + sw * kw)) * _INV_SQRT8
    coeff = jnp.einsum('bcdahewf,aefs->bscdhw', x6, jnp.asarray(filt))
    return coeff.reshape(B, 8 * C, D // 2, H // 2, W // 2)


def _loss_ref(x, y):
    d = jnp.abs(_dwt3_ref(x) - _dwt3_ref(y))
    # mean over dim=1, then keepdim means over the three spatial dims == global
    # mean over all non-batch axes, shape (B, 1, 1, 1).
    return jnp.mean(d, axis=(1, 2, 3, 4)).reshape(-1, 1, 1, 1)


if __name__ == "__main__":
    key = jax.random.PRNGKey(0)
    k1, k2, k3, k4 = jax.random.split(key, 4)

    # ---- test 1: spec-like small shape, f32 --------------------------------
    B, C, D, H, W = 2, 4, 8, 16, 16
    inputs = jax.random.normal(k1, (B, C, D, H, W), dtype=jnp.float32)
    targets = jax.random.normal(k2, (B, C, D, H, W), dtype=jnp.float32)

    out = jax.block_until_ready(wavelet_loss_3d(inputs, targets))
    ref = jax.block_until_ready(_loss_ref(inputs, targets))
    assert out.shape == (B, 1, 1, 1) and out.dtype == jnp.float32
    assert np.allclose(np.asarray(out), np.asarray(ref), rtol=1e-5, atol=1e-6), (out, ref)

    # ---- test 2: bf16 inputs, odd batch -> exercises multi-tile row
    # accumulation, the in-kernel chunk loop, and the 2-way core split. -------
    B2, C2, D2, H2, W2 = 1, 8, 16, 32, 128
    xb = jax.random.normal(k3, (B2, C2, D2, H2, W2), dtype=jnp.float32).astype(jnp.bfloat16)
    yb = jax.random.normal(k4, (B2, C2, D2, H2, W2), dtype=jnp.float32).astype(jnp.bfloat16)

    out2 = jax.block_until_ready(
        wavelet_loss_3d(xb, yb, target_block_bytes=256 * 1024))
    ref2 = jax.block_until_ready(
        _loss_ref(xb.astype(jnp.float32), yb.astype(jnp.float32)))
    assert out2.shape == (B2, 1, 1, 1)
    assert np.allclose(np.asarray(out2), np.asarray(ref2), rtol=1e-4, atol=1e-6), (out2, ref2)

    print("KERNEL_OK")
</pallas_src>

<mosaic_0001>
module attributes {stable_mosaic.version = 11 : i64} {
  func.func @_wavelet_l1_kernel(%arg0: i32, %arg1: i32, %arg2: i32, %arg3: memref<1x16x512xf32, #tpu.memory_space<vmem>>, %arg4: memref<1x16x512xf32, #tpu.memory_space<vmem>>, %arg5: memref<1x1x1x1xf32, #tpu.memory_space<vmem>>, %arg6: memref<8x256xf32, #tpu.memory_space<vmem>>) attributes {dimension_semantics = [#tpu.dimension_semantics<parallel>, #tpu.dimension_semantics<parallel>, #tpu.dimension_semantics<arbitrary>], iteration_bounds = array<i64: 1, 2, 1>, scalar_prefetch = 0 : i64, scratch_operands = 1 : i64, tpu.core_type = #tpu.core_type<tc>, window_params = [{transform_indices = @transform_0, window_bounds = array<i64: 1, 16, 512>}, {transform_indices = @transform_1, window_bounds = array<i64: 1, 16, 512>}, {transform_indices = @transform_2, window_bounds = array<i64: 1, 1, 1, 1>}]} {
    %c0_i32 = arith.constant 0 : i32
    %0 = arith.cmpi eq, %arg2, %c0_i32 : i32
    %1 = arith.extui %0 : i1 to i32
    %c0_i32_0 = arith.constant 0 : i32
    %2 = arith.cmpi ne, %1, %c0_i32_0 : i32
    scf.if %2 {
      %cst_16 = arith.constant 0.000000e+00 : f32
      %42 = vector.broadcast %cst_16 : f32 to vector<8x256xf32>
      %c0_17 = arith.constant 0 : index
      %c0_18 = arith.constant 0 : index
      %43 = vector.load %arg6[%c0_17, %c0_18] : memref<8x256xf32, #tpu.memory_space<vmem>>, vector<8x256xf32>
      tpu.vector_store %arg6[%c0_17, %c0_18], %42 {strides = array<i32>} : memref<8x256xf32, #tpu.memory_space<vmem>>, vector<8x256xf32>,
    } else {
    }
    %3 = tpu.iota {dimensions = array<i32: 1>} : vector<16x512xi32>
    %c1_i32 = arith.constant 1 : i32
    %4 = vector.broadcast %c1_i32 : i32 to vector<16x512xi32>
    %5 = arith.andi %3, %4 : vector<16x512xi32>
    %c0_i32_1 = arith.constant 0 : i32
    %6 = vector.broadcast %c0_i32_1 : i32 to vector<16x512xi32>
    %7 = arith.cmpi eq, %5, %6 : vector<16x512xi32>
    %c16_i32 = arith.constant 16 : i32
    %8 = vector.broadcast %c16_i32 : i32 to vector<16x512xi32>
    %9 = arith.andi %3, %8 : vector<16x512xi32>
    %c0_i32_2 = arith.constant 0 : i32
    %10 = vector.broadcast %c0_i32_2 : i32 to vector<16x512xi32>
    %11 = arith.cmpi eq, %9, %10 : vector<16x512xi32>
    %c0 = arith.constant 0 : index
    %c0_3 = arith.constant 0 : index
    %c0_4 = arith.constant 0 : index
    %12 = vector.load %arg3[%c0, %c0_3, %c0_4] : memref<1x16x512xf32, #tpu.memory_space<vmem>>, vector<1x16x512xf32>
    %13 = vector.shape_cast %12 : vector<1x16x512xf32> to vector<16x512xf32>
    %c0_5 = arith.constant 0 : index
    %c0_6 = arith.constant 0 : index
    %c0_7 = arith.constant 0 : index
    %14 = vector.load %arg4[%c0_5, %c0_6, %c0_7] : memref<1x16x512xf32, #tpu.memory_space<vmem>>, vector<1x16x512xf32>
    %15 = vector.shape_cast %14 : vector<1x16x512xf32> to vector<16x512xf32>
    %16 = arith.subf %13, %15 : vector<16x512xf32>
    %c511_i32 = arith.constant 511 : i32
    %17 = tpu.dynamic_rotate %16 by %c511_i32 dim 1 : vector<16x512xf32>, i32 -> vector<16x512xf32>
    %18 = arith.subf %16, %17 : vector<16x512xf32>
    %c1_i32_8 = arith.constant 1 : i32
    %19 = tpu.dynamic_rotate %18 by %c1_i32_8 dim 1 : vector<16x512xf32>, i32 -> vector<16x512xf32>
    %20 = arith.addf %16, %17 : vector<16x512xf32>
    %21 = arith.select %7, %20, %19 : vector<16x512xi1>, vector<16x512xf32>
    %c496_i32 = arith.constant 496 : i32
    %22 = tpu.dynamic_rotate %21 by %c496_i32 dim 1 : vector<16x512xf32>, i32 -> vector<16x512xf32>
    %23 = arith.subf %21, %22 : vector<16x512xf32>
    %c16_i32_9 = arith.constant 16 : i32
    %24 = tpu.dynamic_rotate %23 by %c16_i32_9 dim 1 : vector<16x512xf32>, i32 -> vector<16x512xf32>
    %25 = arith.addf %21, %22 : vector<16x512xf32>
    %26 = arith.select %11, %25, %24 : vector<16x512xi1>, vector<16x512xf32>
    %27 = vector.extract_strided_slice %26 {offsets = [0, 0], sizes = [16, 256], strides = [1, 1]} : vector<16x512xf32> to vector<16x256xf32>
    %28 = vector.extract_strided_slice %26 {offsets = [0, 256], sizes = [16, 256], strides = [1, 1]} : vector<16x512xf32> to vector<16x256xf32>
    %29 = arith.addf %27, %28 : vector<16x256xf32>
    %30 = math.absf %29 : vector<16x256xf32>
    %31 = arith.subf %27, %28 : vector<16x256xf32>
    %32 = math.absf %31 : vector<16x256xf32>
    %33 = arith.addf %30, %32 : vector<16x256xf32>
    %34 = vector.shape_cast %33 : vector<16x256xf32> to vector<2x8x256xf32>
    %cst = arith.constant dense<0.000000e+00> : vector<8x256xf32>
    %35 = vector.multi_reduction <add>, %34, %cst [0] : vector<2x8x256xf32> to vector<8x256xf32>
    %c0_10 = arith.constant 0 : index
    %c0_11 = arith.constant 0 : index
    %36 = vector.load %arg6[%c0_10, %c0_11] : memref<8x256xf32, #tpu.memory_space<vmem>>, vector<8x256xf32>
    %37 = arith.addf %36, %35 : vector<8x256xf32>
    %c0_12 = arith.constant 0 : index
    %c0_13 = arith.constant 0 : index
    %38 = vector.load %arg6[%c0_12, %c0_13] : memref<8x256xf32, #tpu.memory_space<vmem>>, vector<8x256xf32>
    tpu.vector_store %arg6[%c0_12, %c0_13], %37 {strides = array<i32>} : memref<8x256xf32, #tpu.memory_space<vmem>>, vector<8x256xf32>,
    %c0_i32_14 = arith.constant 0 : i32
    %39 = arith.cmpi eq, %arg2, %c0_i32_14 : i32
    %40 = arith.extui %39 : i1 to i32
    %c0_i32_15 = arith.constant 0 : i32
    %41 = arith.cmpi ne, %40, %c0_i32_15 : i32
    scf.if %41 {
      %c0_16 = arith.constant 0 : index
      %c0_17 = arith.constant 0 : index
      %42 = vector.load %arg6[%c0_16, %c0_17] : memref<8x256xf32, #tpu.memory_space<vmem>>, vector<8x256xf32>
      %43 = vector.shape_cast %42 : vector<8x256xf32> to vector<1x8x256xf32>
      %cst_18 = arith.constant dense<0.000000e+00> : vector<1xf32>
      %44 = vector.multi_reduction <add>, %43, %cst_18 [1, 2] : vector<1x8x256xf32> to vector<1xf32>
      %45 = vector.shape_cast %44 : vector<1xf32> to vector<1x1x1xf32>
      %46 = vector.extract %45[0, 0, 0] : f32 from vector<1x1x1xf32>
      %47 = vector.broadcast %46 : f32 to vector<1x1xf32>
      %cst_19 = arith.constant 4.31583721E-5 : f32
      %48 = vector.broadcast %cst_19 : f32 to vector<1x1xf32>
      %49 = arith.mulf %47, %48 : vector<1x1xf32>
      %50 = vector.shape_cast %49 : vector<1x1xf32> to vector<1x1x1x1xf32>
      %c0_20 = arith.constant 0 : index
      %c0_21 = arith.constant 0 : index
      %c0_22 = arith.constant 0 : index
      %c0_23 = arith.constant 0 : index
      %51 = vector.load %arg5[%c0_20, %c0_21, %c0_22, %c0_23] : memref<1x1x1x1xf32, #tpu.memory_space<vmem>>, vector<1x1x1x1xf32>
      tpu.vector_store %arg5[%c0_20, %c0_21, %c0_22, %c0_23], %50 {strides = array<i32>} : memref<1x1x1x1xf32, #tpu.memory_space<vmem>>, vector<1x1x1x1xf32>,
    } else {
    }
    return
  }
  func.func @transform_0(%arg0: i32, %arg1: i32, %arg2: i32) -> (i32, i32, i32) {
    %c1_i32 = arith.constant 1 : i32
    %0 = arith.muli %arg0, %c1_i32 : i32
    %1 = arith.addi %0, %arg2 : i32
    %c0_i32 = arith.constant 0 : i32
    %c0_i32_0 = arith.constant 0 : i32
    return %arg1, %1, %c0_i32 : i32, i32, i32
  }
  func.func @transform_1(%arg0: i32, %arg1: i32, %arg2: i32) -> (i32, i32, i32) {
    %c1_i32 = arith.constant 1 : i32
    %0 = arith.muli %arg0, %c1_i32 : i32
    %1 = arith.addi %0, %arg2 : i32
    %c0_i32 = arith.constant 0 : i32
    %c0_i32_0 = arith.constant 0 : i32
    return %arg1, %1, %c0_i32 : i32, i32, i32
  }
  func.func @transform_2(%arg0: i32, %arg1: i32, %arg2: i32) -> (i32, i32, i32, i32) {
    %c0_i32 = arith.constant 0 : i32
    %c0_i32_0 = arith.constant 0 : i32
    %c0_i32_1 = arith.constant 0 : i32
    return %arg0, %arg1, %c0_i32, %c0_i32_0 : i32, i32, i32, i32
  }
}

</mosaic_0001>

<llo_original>
// kernel: tpu_custom_call.1
$region0: #{tpu_custom_call.1}
  #allocation0 [shape = 'u32[]', space=smem, size = 0x4, offset = 0x4, fixed_abs, tag = 'smem constant byte address 0x4 - core index']
  #allocation1 [shape = 'u32[72,128]{1,0:T(1,128)}', space=vmem, size = 0x9000, scoped, tag = 'internal scratch']
  #allocation2 [shape = 'f32[8,256]{1,0:T(8,128)}', space=vmem, size = 0x2000, scoped, tag = 'scratch operand']
  %s0 = inlined_call_operand.hbm [shape: f32[2,16,512], index: 0, kind: input, shape index: {}]
  %s1 = inlined_call_operand.hbm [shape: f32[2,16,512], index: 1, kind: input, shape index: {}]
  %s2 = inlined_call_operand.vmem [shape: f32[1,2,1,1], index: 2, kind: output, shape index: {}]
  %s3 = sld [smem:[#allocation0]]
  $region57: #{tpu_custom_call.1} parent=0
    _
  %s5 = ssub.s32 1, %s3
  %s6 = scalar_select 0, %s5, %s3
  $region1: #{tpu_custom_call.1} parent=0
    #allocation3 [shape = 'u8[65536]{0}', space=vmem, size = 0x10000, scoped, tag = 'input window, operand 0']
    #allocation4 [shape = 's32[2]{0}', space=sflag, size = 0x8, scoped, tag = 'scoped memory for tpu_custom_call.1']
    #allocation5 [shape = 'u8[65536]{0}', space=vmem, size = 0x10000, scoped, tag = 'input window, operand 1']
    #allocation6 [shape = 's32[2]{0}', space=sflag, size = 0x8, scoped, tag = 'scoped memory for tpu_custom_call.1']
    %7 = vsyncpa [#allocation4], 0
    %s8 = scalar_lea.sflag [#allocation4], 1
    %9 = vsyncpa %s8, 0
    %10 = vsyncpa [#allocation6], 0
    %s11 = scalar_lea.sflag [#allocation6], 1
    %12 = vsyncpa %s11, 0
    loop: start=0, step=1, limit=4
    $region2: #{tpu_custom_call.1} parent=1 // loop_pre_header
      _
    $region3: #{tpu_custom_call.1} parent=1 // loop_header
      %s14 = sphi 0, %s18
      %p15 = scmp.ge.s32.totalorder %s14, 4
      %s21 = sphi 0, %s40
      %s22 = sphi 0, %s36
      %s23 = sphi 0, %s32
      %s24 = sphi 0, %s21
      %s25 = sphi 0, %s22
      %s26 = sphi 0, %s23
      %s27 = sphi 0, %s24
      %s28 = sphi 0, %s25
      %s29 = sphi 0, %s26
      %s47 = sphi 0, %s49
      %s50 = sphi 0, %s47
      %s51 = sphi 0, %s50
      %s67 = sphi 0, %s51
      %s77 = sphi 0, %s79
      %s80 = sphi 0, %s77
      %s81 = sphi 0, %s80
      %s97 = sphi 0, %s81
      %s105 = sphi 0, %s107
      %s108 = sphi 0, %s105
      %s109 = sphi 0, %s108
      %s125 = sphi 0, %s109
    $region4: #{tpu_custom_call.1} parent=1 // loop_header_branch
      %17 = sbr.rel (%p15) target = $region8
    $region5: #{tpu_custom_call.1} parent=1 // loop_body
      %s19 = ssub.s32 %s14, 1
      %s20 = ssub.s32 %s14, 2
      %s30 = sadd.s32 1, %s23
      %p31 = scmp.ge.s32.totalorder %s30, 1
      %s32 = scalar_select %p31, 0, %s30
      %s33 = sadd.s32 1, %s22
      %s34 = scalar_select %p31, %s33, %s22
      %p35 = scmp.ge.s32.totalorder %s34, 2
      %s36 = scalar_select %p35, 0, %s34
      %s37 = sadd.s32 1, %s21
      %s38 = scalar_select %p35, %s37, %s21
      %p39 = scmp.ge.s32.totalorder %s38, 1
      %s40 = scalar_select %p39, 0, %s38
      %s41 = sadd.s32 %s21, %s23
      %s42 = sadd.s32 %s40, %s32
      %s43 = ssub.s32 %s22, %s36
      %s44 = ssub.s32 %s41, %s42
      %s45 = sor.u32 %s43, %s44
      %p46 = scmp.eq.s32.totalorder %s45, 0
      %s48 = sadd.s32 %s47, 1
      %s49 = scalar_select %p46, %s47, %s48
      %p52 = pneg %p46
      %p53 = scmp.eq.s32.totalorder %s14, 1
      %p54 = por %p52, %p53
      %p55 = scmp.ne.s32.totalorder %s47, %s50
      %p56 = scmp.eq.s32.totalorder %s14, 0
      %p57 = por %p55, %p56
      %p58 = scmp.ne.s32.totalorder %s47, %s50
      %p59 = scmp.eq.s32.totalorder %s19, 1
      %p60 = por %p58, %p59
      %p61 = scmp.ne.s32.totalorder %s50, %s51
      %p62 = scmp.eq.s32.totalorder %s19, 0
      %p63 = por %p61, %p62
      %p64 = scmp.ne.s32.totalorder %s50, %s51
      %p65 = scmp.eq.s32.totalorder %s20, 1
      %p66 = por %p64, %p65
      %p68 = scmp.ne.s32.totalorder %s51, %s67
      %p69 = scmp.eq.s32.totalorder %s20, 0
      %p70 = por %p68, %p69
      %s71 = sadd.s32 %s21, %s23
      %s72 = sadd.s32 %s40, %s32
      %s73 = ssub.s32 %s22, %s36
      %s74 = ssub.s32 %s71, %s72
      %s75 = sor.u32 %s73, %s74
      %p76 = scmp.eq.s32.totalorder %s75, 0
      %s78 = sadd.s32 %s77, 1
      %s79 = scalar_select %p76, %s77, %s78
      %p82 = pneg %p76
      %p83 = scmp.eq.s32.totalorder %s14, 1
      %p84 = por %p82, %p83
      %p85 = scmp.ne.s32.totalorder %s77, %s80
      %p86 = scmp.eq.s32.totalorder %s14, 0
      %p87 = por %p85, %p86
      %p88 = scmp.ne.s32.totalorder %s77, %s80
      %p89 = scmp.eq.s32.totalorder %s19, 1
      %p90 = por %p88, %p89
      %p91 = scmp.ne.s32.totalorder %s80, %s81
      %p92 = scmp.eq.s32.totalorder %s19, 0
      %p93 = por %p91, %p92
      %p94 = scmp.ne.s32.totalorder %s80, %s81
      %p95 = scmp.eq.s32.totalorder %s20, 1
      %p96 = por %p94, %p95
      %p98 = scmp.ne.s32.totalorder %s81, %s97
      %p99 = scmp.eq.s32.totalorder %s20, 0
      %p100 = por %p98, %p99
      %s101 = ssub.s32 %s21, %s40
      %s102 = ssub.s32 %s22, %s36
      %s103 = sor.u32 %s101, %s102
      %p104 = scmp.eq.s32.totalorder %s103, 0
      %s106 = sadd.s32 %s105, 1
      %s107 = scalar_select %p104, %s105, %s106
      %p110 = pneg %p104
      %p111 = scmp.eq.s32.totalorder %s14, 1
      %p112 = por %p110, %p111
      %p113 = scmp.ne.s32.totalorder %s105, %s108
      %p114 = scmp.eq.s32.totalorder %s14, 0
      %p115 = por %p113, %p114
      %p116 = scmp.ne.s32.totalorder %s105, %s108
      %p117 = scmp.eq.s32.totalorder %s19, 1
      %p118 = por %p116, %p117
      %p119 = scmp.ne.s32.totalorder %s108, %s109
      %p120 = scmp.eq.s32.totalorder %s19, 0
      %p121 = por %p119, %p120
      %p122 = scmp.ne.s32.totalorder %s108, %s109
      %p123 = scmp.eq.s32.totalorder %s20, 1
      %p124 = por %p122, %p123
      %p126 = scmp.ne.s32.totalorder %s109, %s125
      %p127 = scmp.eq.s32.totalorder %s20, 0
      %p128 = por %p126, %p127
      %p129 = scmp.le.s32.totalorder 1, %s14
      %p130 = scmp.lt.s32.totalorder %s14, 3
      %p131 = pnand %p129, %p130
      %p132 = pneg %p131
      // Predicated region
      $region9: #{tpu_custom_call.1} parent=5 // pred_check
        _
      $region10: #{tpu_custom_call.1} parent=5 // pred_check_branch
        %134 = sbr.rel (%p131) target = $region12
      $region11: #{tpu_custom_call.1} parent=5 // pred_region
        %s135 = ssub.s32 %s14, 1
      $region12: #{tpu_custom_call.1} parent=5 // pred_fallthru
        _
      %p136 = scmp.lt.s32.totalorder %s14, 2
      // Predicated region
      $region13: #{tpu_custom_call.1} parent=5 // pred_check
        %p137 = pneg %p136
      $region14: #{tpu_custom_call.1} parent=5 // pred_check_branch
        %139 = sbr.rel (%p137) target = $region16
      $region15: #{tpu_custom_call.1} parent=5 // pred_region
        // Predicated region
        $region17: #{tpu_custom_call.1} parent=15 // pred_check
          %p140 = pneg %p57
        $region18: #{tpu_custom_call.1} parent=15 // pred_check_branch
          %142 = sbr.rel (%p140) target = $region20
        $region19: #{tpu_custom_call.1} parent=15 // pred_region
          %s143 = sand.u32 %s47, 1
          %s144 = scalar_lea.sflag [#allocation4], %s143
          %s145 = sand.u32 %s47, 1
          %s146 = smul.addr %s145, 64
          %s147 = scalar_lea.vmem [#allocation3], %s146
          %s148 = sadd.s32 %s21, %s23
          %s149 = smul.u32 2, %s148
          %151 = vsyncadd %s144, 0
          %s152 = smul.addr %s149, 4
          %s153 = smul.addr %s22, 8
          %s154 = sadd.s32 %s152, %s153
          %s155 = smul.addr %s154, 8
          %s156 = scalar_lea.hbm %s0, %s155
          %s157 = sshll.u32 %s156, 4
          %s158 = int_to_ptr.hbm [resolvable:$true] %s157
          %s159 = sshll.u32 %s147, 4
          %s160 = int_to_ptr.vmem [resolvable:$true] %s159
          %165 = dma.hbm_to_vmem [thread:$0]  %s158, 1024, %s160, %s144, 512, 512, 32
        $region20: #{tpu_custom_call.1} parent=15 // pred_fallthru
          _
        // Predicated region
        $region21: #{tpu_custom_call.1} parent=15 // pred_check
          %p166 = pneg %p87
        $region22: #{tpu_custom_call.1} parent=15 // pred_check_branch
          %168 = sbr.rel (%p166) target = $region24
        $region23: #{tpu_custom_call.1} parent=15 // pred_region
          %s169 = sand.u32 %s77, 1
          %s170 = scalar_lea.sflag [#allocation6], %s169
          %s171 = sand.u32 %s77, 1
          %s172 = smul.addr %s171, 64
          %s173 = scalar_lea.vmem [#allocation5], %s172
          %s174 = sadd.s32 %s21, %s23
          %s175 = smul.u32 2, %s174
          %177 = vsyncadd %s170, 0
          %s178 = smul.addr %s175, 4
          %s179 = smul.addr %s22, 8
          %s180 = sadd.s32 %s178, %s179
          %s181 = smul.addr %s180, 8
          %s182 = scalar_lea.hbm %s1, %s181
          %s183 = sshll.u32 %s182, 4
          %s184 = int_to_ptr.hbm [resolvable:$true] %s183
          %s185 = sshll.u32 %s173, 4
          %s186 = int_to_ptr.vmem [resolvable:$true] %s185
          %191 = dma.hbm_to_vmem [thread:$0]  %s184, 1024, %s186, %s170, 512, 512, 32
        $region24: #{tpu_custom_call.1} parent=15 // pred_fallthru
          _
      $region16: #{tpu_custom_call.1} parent=5 // pred_fallthru
        _
      %p192 = scmp.le.s32.totalorder 1, %s14
      %p193 = scmp.lt.s32.totalorder %s14, 3
      %p194 = pnand %p192, %p193
      %p195 = pneg %p194
      // Predicated region
      $region25: #{tpu_custom_call.1} parent=5 // pred_check
        _
      $region26: #{tpu_custom_call.1} parent=5 // pred_check_branch
        %197 = sbr.rel (%p194) target = $region28
      $region27: #{tpu_custom_call.1} parent=5 // pred_region
        %s198 = ssub.s32 %s14, 1
        %s199 = sand.u32 %s50, 1
        %s200 = scalar_lea.sflag [#allocation4], %s199
        %s201 = sand.u32 %s50, 1
        %s202 = smul.addr %s201, 64
        %s203 = scalar_lea.vmem [#allocation3], %s202
        // Predicated region
        $region29: #{tpu_custom_call.1} parent=27 // pred_check
          %p204 = pneg %p63
        $region30: #{tpu_custom_call.1} parent=27 // pred_check_branch
          %206 = sbr.rel (%p204) target = $region32
        $region31: #{tpu_custom_call.1} parent=27 // pred_region
          %208 = dma.done %s200, 1024
        $region32: #{tpu_custom_call.1} parent=27 // pred_fallthru
          _
        %s209 = sand.u32 %s80, 1
        %s210 = scalar_lea.sflag [#allocation6], %s209
        %s211 = sand.u32 %s80, 1
        %s212 = smul.addr %s211, 64
        %s213 = scalar_lea.vmem [#allocation5], %s212
        // Predicated region
        $region33: #{tpu_custom_call.1} parent=27 // pred_check
          %p214 = pneg %p93
        $region34: #{tpu_custom_call.1} parent=27 // pred_check_branch
          %216 = sbr.rel (%p214) target = $region36
        $region35: #{tpu_custom_call.1} parent=27 // pred_region
          %218 = dma.done %s210, 1024
        $region36: #{tpu_custom_call.1} parent=27 // pred_fallthru
          _
        %s219 = sand.u32 %s50, 1
        %s220 = scalar_lea.sflag [#allocation4], %s219
        %s221 = sand.u32 %s50, 1
        %s222 = smul.addr %s221, 64
        %s223 = scalar_lea.vmem [#allocation3], %s222
        %p224 = pneg %p63
        %p225 = pneg %p60
        %s226 = sand.u32 %s80, 1
        %s227 = scalar_lea.sflag [#allocation6], %s226
        %s228 = sand.u32 %s80, 1
        %s229 = smul.addr %s228, 64
        %s230 = scalar_lea.vmem [#allocation5], %s229
        %p231 = pneg %p93
        %p232 = pneg %p90
        %p233 = pneg %p121
        %p234 = pneg %p118
        %p235 = scmp.lt.s32.totalorder %s24, 0
        %s236 = scalar_select %p235, %s24, 0
        %p237 = scmp.lt.s32.totalorder %s25, 1
        %s238 = scalar_select %p237, %s25, 1
        %s239 = smul.addr %s236, 2
        %s240 = sadd.s32 %s238, %s239
        %s241 = scalar_lea.vmem %s2, %s240
        %s242 = sadd.s32 %s24, %s26
        %s243 = smul.u32 2, %s242
        %s244 = sadd.s32 %s24, %s26
        %s245 = smul.u32 2, %s244
        %p246 = scmp.lt.s32.totalorder %s24, 0
        %s247 = scalar_select %p246, %s24, 0
        %p248 = scmp.lt.s32.totalorder %s25, 1
        %s249 = scalar_select %p248, %s25, 1
        %s250 = smul.addr %s247, 2
        %s251 = sadd.s32 %s249, %s250
        %s252 = scalar_lea.vmem %s2, %s251
        %p253 = scmp.eq.s32.totalorder %s26, 0
        // Predicated region
        $region37: #{tpu_custom_call.1} parent=27 // pred_check
          %p254 = pneg %p253
        $region38: #{tpu_custom_call.1} parent=27 // pred_check_branch
          %256 = sbr.rel (%p254) target = $region40
        $region39: #{tpu_custom_call.1} parent=27 // pred_region
          %257 = vst [vmem:[#allocation2] sm:$0xff] 0.0
          %258 = vst [vmem:[#allocation2 + $0x8] sm:$0xff] 0.0
        $region40: #{tpu_custom_call.1} parent=27 // pred_fallthru
          _
        %v259 = vlaneseq
        %v260 = vand.u32 %v259, 127
        %v261 = vadd.s32 %v260, 128
        %v262 = vadd.s32 %v260, 256
        %v263 = vadd.s32 %v260, 384
        %v264 = vand.u32 %v260, 1
        %v265 = vand.u32 %v261, 1
        %v266 = vand.u32 %v262, 1
        %v267 = vand.u32 %v263, 1
        %vm268 = vcmp.eq.s32.totalorder %v264, 0
        %vm269 = vcmp.eq.s32.totalorder %v265, 0
        %vm270 = vcmp.eq.s32.totalorder %v266, 0
        %vm271 = vcmp.eq.s32.totalorder %v267, 0
        %v272 = vand.u32 %v260, 16
        %v273 = vand.u32 %v261, 16
        %v274 = vand.u32 %v262, 16
        %v275 = vand.u32 %v263, 16
        %vm276 = vcmp.eq.s32.totalorder %v272, 0
        %vm277 = vcmp.eq.s32.totalorder %v273, 0
        %vm278 = vcmp.eq.s32.totalorder %v274, 0
        %vm279 = vcmp.eq.s32.totalorder %v275, 0
        %v280 = vld [vmem:[%s203] sm:$0xff]
        %v281 = vld [vmem:[%s203 + $0x8] sm:$0xff]
        %v282 = vld [vmem:[%s203 + $0x10] sm:$0xff]
        %v283 = vld [vmem:[%s203 + $0x18] sm:$0xff]
        %v284 = vld [vmem:[%s203 + $0x20] sm:$0xff]
        %v285 = vld [vmem:[%s203 + $0x28] sm:$0xff]
        %v286 = vld [vmem:[%s203 + $0x30] sm:$0xff]
        %v287 = vld [vmem:[%s203 + $0x38] sm:$0xff]
        %v288 = vld [vmem:[%s213] sm:$0xff]
        %v289 = vld [vmem:[%s213 + $0x8] sm:$0xff]
        %v290 = vld [vmem:[%s213 + $0x10] sm:$0xff]
        %v291 = vld [vmem:[%s213 + $0x18] sm:$0xff]
        %v292 = vld [vmem:[%s213 + $0x20] sm:$0xff]
        %v293 = vld [vmem:[%s213 + $0x28] sm:$0xff]
        %v294 = vld [vmem:[%s213 + $0x30] sm:$0xff]
        %v295 = vld [vmem:[%s213 + $0x38] sm:$0xff]
        %v296 = vsub.f32 %v280, %v288
        %v297 = vsub.f32 %v281, %v289
        %v298 = vsub.f32 %v282, %v290
        %v299 = vsub.f32 %v283, %v291
        %v300 = vsub.f32 %v284, %v292
        %v301 = vsub.f32 %v285, %v293
        %v302 = vsub.f32 %v286, %v294
        %v303 = vsub.f32 %v287, %v295
        %304 = vrot.lane.b32.xlu0 %v296, 127
        %v305 = vpop.permute.xlu0 %304
        %306 = vrot.lane.b32.xlu0 %v300, 127
        %v307 = vpop.permute.xlu0 %306
        %308 = vrot.lane.b32.xlu0 %v297, 127
        %v309 = vpop.permute.xlu0 %308
        %310 = vrot.lane.b32.xlu0 %v301, 127
        %v311 = vpop.permute.xlu0 %310
        %312 = vrot.lane.b32.xlu0 %v298, 127
        %v313 = vpop.permute.xlu0 %312
        %314 = vrot.lane.b32.xlu0 %v302, 127
        %v315 = vpop.permute.xlu0 %314
        %316 = vrot.lane.b32.xlu0 %v299, 127
        %v317 = vpop.permute.xlu0 %316
        %318 = vrot.lane.b32.xlu0 %v303, 127
        %v319 = vpop.permute.xlu0 %318
        %vm320 = vcmp.lt.s32.totalorder %v260, 127
        %v321 = vsel %vm320, %v313, %v317
        %v322 = vsel %vm320, %v315, %v319
        %v323 = vsel %vm320, %v309, %v313
        %v324 = vsel %vm320, %v311, %v315
        %v325 = vsel %vm320, %v305, %v309
        %v326 = vsel %vm320, %v307, %v311
        %v327 = vsel %vm320, %v317, %v305
        %v328 = vsel %vm320, %v319, %v307
        %v329 = vsub.f32 %v296, %v325
        %v330 = vsub.f32 %v297, %v323
        %v331 = vsub.f32 %v298, %v321
        %v332 = vsub.f32 %v299, %v327
        %v333 = vsub.f32 %v300, %v326
        %v334 = vsub.f32 %v301, %v324
        %v335 = vsub.f32 %v302, %v322
        %v336 = vsub.f32 %v303, %v328
        %337 = vrot.lane.b32.xlu0 %v329, 1
        %v338 = vpop.permute.xlu0 %337
        %339 = vrot.lane.b32.xlu0 %v333, 1
        %v340 = vpop.permute.xlu0 %339
        %341 = vrot.lane.b32.xlu0 %v330, 1
        %v342 = vpop.permute.xlu0 %341
        %343 = vrot.lane.b32.xlu0 %v334, 1
        %v344 = vpop.permute.xlu0 %343
        %345 = vrot.lane.b32.xlu0 %v331, 1
        %v346 = vpop.permute.xlu0 %345
        %347 = vrot.lane.b32.xlu0 %v335, 1
        %v348 = vpop.permute.xlu0 %347
        %349 = vrot.lane.b32.xlu0 %v332, 1
        %v350 = vpop.permute.xlu0 %349
        %351 = vrot.lane.b32.xlu0 %v336, 1
        %v352 = vpop.permute.xlu0 %351
        %vm353 = vcmp.lt.s32.totalorder %v260, 1
        %v354 = vsel %vm353, %v346, %v350
        %v355 = vsel %vm353, %v348, %v352
        %v356 = vsel %vm353, %v342, %v346
        %v357 = vsel %vm353, %v344, %v348
        %v358 = vsel %vm353, %v338, %v342
        %v359 = vsel %vm353, %v340, %v344
        %v360 = vsel %vm353, %v350, %v338
        %v361 = vsel %vm353, %v352, %v340
        %v362 = vadd.f32 %v296, %v325
        %v363 = vadd.f32 %v297, %v323
        %v364 = vadd.f32 %v298, %v321
        %v365 = vadd.f32 %v299, %v327
        %v366 = vadd.f32 %v300, %v326
        %v367 = vadd.f32 %v301, %v324
        %v368 = vadd.f32 %v302, %v322
        %v369 = vadd.f32 %v303, %v328
        %v370 = vsel %vm268, %v362, %v360
        %v371 = vsel %vm269, %v363, %v358
        %v372 = vsel %vm270, %v364, %v356
        %v373 = vsel %vm271, %v365, %v354
        %v374 = vsel %vm268, %v366, %v361
        %v375 = vsel %vm269, %v367, %v359
        %v376 = vsel %vm270, %v368, %v357
        %v377 = vsel %vm271, %v369, %v355
        %378 = vrot.lane.b32.xlu0 %v370, 112
        %v379 = vpop.permute.xlu0 %378
        %380 = vrot.lane.b32.xlu0 %v374, 112
        %v381 = vpop.permute.xlu0 %380
        %382 = vrot.lane.b32.xlu0 %v371, 112
        %v383 = vpop.permute.xlu0 %382
        %384 = vrot.lane.b32.xlu0 %v375, 112
        %v385 = vpop.permute.xlu0 %384
        %386 = vrot.lane.b32.xlu0 %v372, 112
        %v387 = vpop.permute.xlu0 %386
        %388 = vrot.lane.b32.xlu0 %v376, 112
        %v389 = vpop.permute.xlu0 %388
        %390 = vrot.lane.b32.xlu0 %v373, 112
        %v391 = vpop.permute.xlu0 %390
        %392 = vrot.lane.b32.xlu0 %v377, 112
        %v393 = vpop.permute.xlu0 %392
        %vm394 = vcmp.lt.s32.totalorder %v260, 112
        %v395 = vsel %vm394, %v387, %v391
        %v396 = vsel %vm394, %v389, %v393
        %v397 = vsel %vm394, %v383, %v387
        %v398 = vsel %vm394, %v385, %v389
        %v399 = vsel %vm394, %v379, %v383
        %v400 = vsel %vm394, %v381, %v385
        %v401 = vsel %vm394, %v391, %v379
        %v402 = vsel %vm394, %v393, %v381
        %v403 = vsub.f32 %v370, %v399
        %v404 = vsub.f32 %v371, %v397
        %v405 = vsub.f32 %v372, %v395
        %v406 = vsub.f32 %v373, %v401
        %v407 = vsub.f32 %v374, %v400
        %v408 = vsub.f32 %v375, %v398
        %v409 = vsub.f32 %v376, %v396
        %v410 = vsub.f32 %v377, %v402
        %411 = vrot.lane.b32.xlu0 %v403, 16
        %v412 = vpop.permute.xlu0 %411
        %413 = vrot.lane.b32.xlu0 %v407, 16
        %v414 = vpop.permute.xlu0 %413
        %415 = vrot.lane.b32.xlu0 %v404, 16
        %v416 = vpop.permute.xlu0 %415
        %417 = vrot.lane.b32.xlu0 %v408, 16
        %v418 = vpop.permute.xlu0 %417
        %419 = vrot.lane.b32.xlu0 %v405, 16
        %v420 = vpop.permute.xlu0 %419
        %421 = vrot.lane.b32.xlu0 %v409, 16
        %v422 = vpop.permute.xlu0 %421
        %423 = vrot.lane.b32.xlu0 %v406, 16
        %v424 = vpop.permute.xlu0 %423
        %425 = vrot.lane.b32.xlu0 %v410, 16
        %v426 = vpop.permute.xlu0 %425
        %vm427 = vcmp.lt.s32.totalorder %v260, 16
        %v428 = vsel %vm427, %v420, %v424
        %v429 = vsel %vm427, %v422, %v426
        %v430 = vsel %vm427, %v416, %v420
        %v431 = vsel %vm427, %v418, %v422
        %v432 = vsel %vm427, %v412, %v416
        %v433 = vsel %vm427, %v414, %v418
        %v434 = vsel %vm427, %v424, %v412
        %v435 = vsel %vm427, %v426, %v414
        %v436 = vadd.f32 %v370, %v399
        %v437 = vadd.f32 %v371, %v397
        %v438 = vadd.f32 %v372, %v395
        %v439 = vadd.f32 %v373, %v401
        %v440 = vadd.f32 %v374, %v400
        %v441 = vadd.f32 %v375, %v398
        %v442 = vadd.f32 %v376, %v396
        %v443 = vadd.f32 %v377, %v402
        %v444 = vsel %vm276, %v436, %v434
        %v445 = vsel %vm277, %v437, %v432
        %v446 = vsel %vm278, %v438, %v430
        %v447 = vsel %vm279, %v439, %v428
        %v448 = vsel %vm276, %v440, %v435
        %v449 = vsel %vm277, %v441, %v433
        %v450 = vsel %vm278, %v442, %v431
        %v451 = vsel %vm279, %v443, %v429
        %v452 = vadd.f32 %v444, %v446
        %v453 = vadd.f32 %v445, %v447
        %v454 = vadd.f32 %v448, %v450
        %v455 = vadd.f32 %v449, %v451
        %v456 = vand.u32 2147483647, %v452
        %v457 = vand.u32 2147483647, %v453
        %v458 = vand.u32 2147483647, %v454
        %v459 = vand.u32 2147483647, %v455
        %v460 = vsub.f32 %v444, %v446
        %v461 = vsub.f32 %v445, %v447
        %v462 = vsub.f32 %v448, %v450
        %v463 = vsub.f32 %v449, %v451
        %v464 = vand.u32 2147483647, %v460
        %v465 = vand.u32 2147483647, %v461
        %v466 = vand.u32 2147483647, %v462
        %v467 = vand.u32 2147483647, %v463
        %v468 = vadd.f32 %v456, %v464
        %v469 = vadd.f32 %v457, %v465
        %v470 = vadd.f32 %v458, %v466
        %v471 = vadd.f32 %v459, %v467
        %v472 = vadd.f32 %v468, %v470
        %v473 = vadd.f32 %v469, %v471
        %v474 = vld [vmem:[#allocation2] sm:$0xff]
        %v475 = vld [vmem:[#allocation2 + $0x8] sm:$0xff]
        %v476 = vadd.f32 %v474, %v472
        %v477 = vadd.f32 %v475, %v473
        %478 = vst [vmem:[#allocation2] sm:$0xff] %v476
        %479 = vst [vmem:[#allocation2 + $0x8] sm:$0xff] %v477
        // Predicated region
        $region41: #{tpu_custom_call.1} parent=27 // pred_check
          %p480 = pneg %p253
        $region42: #{tpu_custom_call.1} parent=27 // pred_check_branch
          %482 = sbr.rel (%p480) target = $region44
        $region43: #{tpu_custom_call.1} parent=27 // pred_region
          %v483 = vld [vmem:[#allocation2] sm:$0xff]
          %v484 = vld [vmem:[#allocation2 + $0x8] sm:$0xff]
          %v485 = vadd.f32 %v483, %v484
          %486 = vadd.xlane.f32.xlu0 %v485
          %v487 = vpop.xlane.xlu0 %486
          %v488 = vrot.slane %v487, 4
          %v489 = vadd.f32 %v487, %v488
          %v490 = vrot.slane %v489, 2
          %v491 = vadd.f32 %v489, %v490
          %v492 = vrot.slane %v491, 1
          %v493 = vadd.f32 %v491, %v492
          %s494 = vtos %v493
          %v495 = vstv %s494
          %v496 = vmul.f32 %v495, 4.3158372e-05
          %vm497 = vcmask 0
          %498 = vst.msk [vmem:[%s252] sm:$0x1] %vm497, %v496
        $region44: #{tpu_custom_call.1} parent=27 // pred_fallthru
          _
        %p499 = scmp.lt.s32.totalorder %s24, 0
        %s500 = scalar_select %p499, %s24, 0
        %p501 = scmp.lt.s32.totalorder %s25, 1
        %s502 = scalar_select %p501, %s25, 1
        %s503 = smul.addr %s500, 2
        %s504 = sadd.s32 %s502, %s503
        %s505 = scalar_lea.vmem %s2, %s504
        // Predicated region
        $region45: #{tpu_custom_call.1} parent=27 // pred_check
          %p506 = pneg %p118
        $region46: #{tpu_custom_call.1} parent=27 // pred_check_branch
          %508 = sbr.rel (%p506) target = $region48
        $region47: #{tpu_custom_call.1} parent=27 // pred_region
          _
        $region48: #{tpu_custom_call.1} parent=27 // pred_fallthru
          _
      $region28: #{tpu_custom_call.1} parent=5 // pred_fallthru
        _
      %p509 = scmp.le.s32.totalorder 2, %s14
      // Predicated region
      $region49: #{tpu_custom_call.1} parent=5 // pred_check
        %p510 = pneg %p509
      $region50: #{tpu_custom_call.1} parent=5 // pred_check_branch
        %512 = sbr.rel (%p510) target = $region52
      $region51: #{tpu_custom_call.1} parent=5 // pred_region
        %s513 = ssub.s32 %s14, 2
        // Predicated region
        $region53: #{tpu_custom_call.1} parent=51 // pred_check
          %p514 = pneg %p124
        $region54: #{tpu_custom_call.1} parent=51 // pred_check_branch
          %516 = sbr.rel (%p514) target = $region56
        $region55: #{tpu_custom_call.1} parent=51 // pred_region
          %p517 = scmp.lt.s32.totalorder %s27, 0
          %s518 = scalar_select %p517, %s27, 0
          %p519 = scmp.lt.s32.totalorder %s28, 1
          %s520 = scalar_select %p519, %s28, 1
          %s521 = smul.addr %s518, 2
          %s522 = sadd.s32 %s520, %s521
          %s523 = scalar_lea.vmem %s2, %s522
        $region56: #{tpu_custom_call.1} parent=51 // pred_fallthru
          _
      $region52: #{tpu_custom_call.1} parent=5 // pred_fallthru
        _
    $region6: #{tpu_custom_call.1} parent=1 // loop_footer
      %s18 = sadd.s32 1, %s14
    $region7: #{tpu_custom_call.1} parent=1 // loop_footer_branch
      %13 = sbr.rel target = $region3
    $region8: #{tpu_custom_call.1} parent=1 // loop_exit
      _
    %524 = vsyncpa [#allocation4], 1
    %s525 = scalar_lea.sflag [#allocation4], 1
    %526 = vsyncpa %s525, 1
    %527 = vsyncpa [#allocation6], 1
    %s528 = scalar_lea.sflag [#allocation6], 1
    %529 = vsyncpa %s528, 1

</llo_original>
